<compile_context>
chip_gen: v6e
topology: v6e:2x2x1
jax: 0.10.0
libtpu: 0.0.40
codegen_flags: <defaults>
</compile_context>

<pallas_src>
import functools

import jax
import jax.numpy as jnp
from jax.experimental import pallas as pl
from jax.experimental.pallas import tpu as pltpu


# ---------------------------------------------------------------------------
# Kernels
# ---------------------------------------------------------------------------

def _linear_resident_kernel(x_ref, w_ref, b_ref, o_ref):
    """K-resident path: full in_features per block, no reduction grid axis.

    x_ref: (chunk, K)    w_ref: (tn, K)  -- PyTorch (out, in) layout
    b_ref: (1, tn) f32   o_ref: (chunk, tn)
    """
    # y = x @ w.T : contract last dims; MXU handles the transposed RHS.
    # TODO(synk): verify in the bundle dump that no vxpose of the weight tile
    # is emitted; if it is, pre-transpose the weight once to (in, out) at init.
    acc = jax.lax.dot_general(
        x_ref[...], w_ref[...],
        dimension_numbers=(((1,), (1,)), ((), ())),
        preferred_element_type=jnp.float32,
    )
    o_ref[...] = (acc + b_ref[...]).astype(o_ref.dtype)


def _masked_x_w(x, w, k, tk, in_features, ragged_k):
    """Zero the padded columns of a ragged last K tile (both operands, so
    garbage NaN/Inf from the padded reads can never reach the MXU)."""
    if not ragged_k:
        return x, w
    col_x = k * tk + jax.lax.broadcasted_iota(jnp.int32, x.shape, 1)
    col_w = k * tk + jax.lax.broadcasted_iota(jnp.int32, w.shape, 1)
    x = jnp.where(col_x < in_features, x, jnp.zeros_like(x))
    w = jnp.where(col_w < in_features, w, jnp.zeros_like(w))
    return x, w


def _linear_ktiled_scratch_kernel(x_ref, w_ref, b_ref, o_ref, acc_ref, *,
                                  tk, in_features, ragged_k):
    """K-tiled fallback with an f32 VMEM accumulator (out_dtype != f32)."""
    k = pl.program_id(2)

    @pl.when(k == 0)
    def _():
        acc_ref[...] = jnp.zeros_like(acc_ref)

    x, w = _masked_x_w(x_ref[...], w_ref[...], k, tk, in_features, ragged_k)
    acc_ref[...] += jax.lax.dot_general(
        x, w,
        dimension_numbers=(((1,), (1,)), ((), ())),
        preferred_element_type=jnp.float32,
    )

    @pl.when(k == pl.num_programs(2) - 1)
    def _():
        o_ref[...] = (acc_ref[...] + b_ref[...]).astype(o_ref.dtype)


def _linear_ktiled_inout_kernel(x_ref, w_ref, b_ref, o_ref, *,
                                tk, in_features, ragged_k):
    """K-tiled fallback accumulating directly into the f32 output block.

    Saves the scratch buffer and one full (chunk, tn) store pass per output
    tile (helps v5e's single vector-store slot, frees chunk*tn*4 B of VMEM).
    """
    k = pl.program_id(2)

    @pl.when(k == 0)
    def _():
        o_ref[...] = jnp.broadcast_to(b_ref[...], o_ref.shape)

    x, w = _masked_x_w(x_ref[...], w_ref[...], k, tk, in_features, ragged_k)
    o_ref[...] += jax.lax.dot_general(
        x, w,
        dimension_numbers=(((1,), (1,)), ((), ())),
        preferred_element_type=jnp.float32,
    )


# ---------------------------------------------------------------------------
# Wrapper
# ---------------------------------------------------------------------------

def _vmem_budget_bytes():
    """~3/4 of physical VMEM: ~96 MiB on 128-MiB chips (v5e/v6e), ~48 MiB on
    v7x (64 MiB).  Falls back to the 128-MiB assumption if the query fails."""
    try:
        cap = int(pltpu.get_tpu_info().vmem_capacity_bytes)
    except Exception:  # noqa: BLE001 - best-effort hardware query
        cap = 128 << 20
    return int(min(cap * 3 // 4, 100 << 20))


def _round_up(v, m):
    return ((v + m - 1) // m) * m


@functools.partial(
    jax.jit, static_argnames=("chunk_size", "tk", "tn", "out_dtype"))
def memory_efficient_linear(x, weight, bias=None, *, chunk_size=1024,
                            tk=None, tn=None, out_dtype=None):
    """y = x @ weight.T + bias, processed `chunk_size` batch rows at a time.

    weight is in the PyTorch (out_features, in_features) layout.  Pass x and
    weight in their at-rest dtype (e.g. bf16) -- no wrapper-side casts are
    performed.  Accumulation is always f32.  Passing `tk` forces the K-tiled
    path (normally chosen automatically only when the K-resident tiles would
    exceed the VMEM budget).
    """
    batch, in_features = x.shape
    out_features, in_features_w = weight.shape
    assert in_features == in_features_w

    if out_dtype is None:
        out_dtype = x.dtype
    if bias is None:
        bias = jnp.zeros((out_features,), jnp.float32)
    b2 = bias.reshape(1, out_features).astype(jnp.float32)

    x_bytes = jnp.dtype(x.dtype).itemsize
    w_bytes = jnp.dtype(weight.dtype).itemsize
    o_bytes = jnp.dtype(out_dtype).itemsize
    budget = _vmem_budget_bytes()

    # ---- batch chunk: round to the compute dtype's sublane packing --------
    packing = max(8, 32 // x_bytes)          # 8 (f32) / 16 (bf16) / 32 (int8)
    chunk = min(chunk_size, batch)
    if chunk < batch:
        chunk = _round_up(chunk, packing)
        if chunk >= batch:
            chunk = batch                    # full-dim block: no constraint

    # ---- N tile: lane-dense (multiple of 128) or the full out dim ---------
    if tn is None:
        tn = out_features if out_features <= 1024 else 512
    assert tn == out_features or tn % 128 == 0, (
        "tn must be a multiple of 128 or equal out_features")

    bias_vmem = 2 * tn * 4

    def resident_vmem(c):
        # x, weight, output are all double-buffered by the BlockSpec pipeline.
        return (2 * c * in_features * x_bytes
                + 2 * tn * in_features * w_bytes
                + 2 * c * tn * o_bytes
                + bias_vmem)

    # ---- path selection ----------------------------------------------------
    # Preferred: K un-tiled so the activation chunk stays VMEM-resident across
    # the whole N sweep (halves HBM reads vs re-streaming x per N tile, and
    # removes the accumulator read-modify-write entirely).
    use_resident = (tk is None) and resident_vmem(chunk) <= budget
    if (tk is None) and not use_resident:
        # Shrink the batch chunk (down to 256) before giving up on residency.
        c = chunk
        while c > 256:
            c = max(256, _round_up(c // 2, packing))
            if resident_vmem(c) <= budget:
                chunk = c
                use_resident = True
                break
            if c == 256:
                break
        # TODO(synk): on v7x, a pipeline_mode=pl.Buffered(1) x spec (x only
        # changes once per batch chunk) would halve its footprint and keep
        # larger chunks resident; left out to keep one code path per kernel.

    if use_resident:
        grid = (pl.cdiv(batch, chunk), pl.cdiv(out_features, tn))
        vmem_est = resident_vmem(chunk)
        kernel = _linear_resident_kernel
        in_specs = [
            pl.BlockSpec((chunk, in_features), lambda i, n: (i, 0)),
            pl.BlockSpec((tn, in_features), lambda i, n: (n, 0)),
            pl.BlockSpec((1, tn), lambda i, n: (0, n)),
        ]
        out_specs = pl.BlockSpec((chunk, tn), lambda i, n: (i, n))
        scratch_shapes = []
        dim_sem = ("parallel", "parallel")
    else:
        # K-tiled fallback (very large in_features, or explicit tk): big,
        # 128-aligned K tiles; ragged last K tile handled by in-kernel masking.
        acc_in_out = jnp.dtype(out_dtype) == jnp.float32

        def tiled_vmem(k_tile):
            b = (2 * chunk * k_tile * x_bytes
                 + 2 * tn * k_tile * w_bytes
                 + 2 * chunk * tn * o_bytes
                 + bias_vmem)
            if not acc_in_out:
                b += chunk * tn * 4          # f32 accumulator scratch
            return b

        if tk is None:
            tk = min(_round_up(in_features, 128), 2048)
            while tk > 128 and tiled_vmem(tk) > budget:
                tk -= 128
            if tk >= in_features:
                tk = in_features
        assert tk == in_features or tk % 128 == 0, (
            "tk must be a multiple of 128 or equal in_features")
        ragged_k = (in_features % tk) != 0

        grid = (pl.cdiv(batch, chunk), pl.cdiv(out_features, tn),
                pl.cdiv(in_features, tk))
        vmem_est = tiled_vmem(tk)
        if acc_in_out:
            kernel = functools.partial(
                _linear_ktiled_inout_kernel,
                tk=tk, in_features=in_features, ragged_k=ragged_k)
            scratch_shapes = []
        else:
            kernel = functools.partial(
                _linear_ktiled_scratch_kernel,
                tk=tk, in_features=in_features, ragged_k=ragged_k)
            scratch_shapes = [pltpu.VMEM((chunk, tn), jnp.float32)]
        in_specs = [
            pl.BlockSpec((chunk, tk), lambda i, n, k: (i, k)),
            pl.BlockSpec((tn, tk), lambda i, n, k: (n, k)),
            pl.BlockSpec((1, tn), lambda i, n, k: (0, n)),
        ]
        out_specs = pl.BlockSpec((chunk, tn), lambda i, n, k: (i, n))
        dim_sem = ("parallel", "parallel", "arbitrary")

    vmem_limit = int(min(budget, max(16 << 20, vmem_est + (8 << 20))))

    out = pl.pallas_call(
        kernel,
        out_shape=jax.ShapeDtypeStruct((batch, out_features), out_dtype),
        grid_spec=pltpu.PrefetchScalarGridSpec(
            num_scalar_prefetch=0,
            grid=grid,
            in_specs=in_specs,
            out_specs=out_specs,
            scratch_shapes=scratch_shapes,
        ),
        compiler_params=pltpu.CompilerParams(
            dimension_semantics=dim_sem,
            vmem_limit_bytes=vmem_limit,
        ),
    )(x, weight, b2)
    return out


def init_params(key, in_features, out_features):
    """Deterministic init mirroring the PyTorch kaiming_uniform/bias init."""
    kw, kb = jax.random.split(key)
    bound = 1.0 / jnp.sqrt(jnp.float32(in_features))
    weight = jax.random.uniform(
        kw, (out_features, in_features), jnp.float32, -bound, bound)
    bias = jax.random.uniform(kb, (out_features,), jnp.float32, -bound, bound)
    return weight, bias


if __name__ == "__main__":
    key = jax.random.PRNGKey(0)
    kx, kp = jax.random.split(key)

    # Small shapes that still exercise every code path:
    #   batch=300, chunk=128 -> 3 batch chunks (last one ragged: masked writes)
    #   out_features=256     -> lane-dense N (full or 2x128 tiles)
    #   in_features=512      -> K-resident by default; forced K-tiling below
    batch, in_features, out_features = 300, 512, 256

    x = jax.random.normal(kx, (batch, in_features), jnp.float32)
    weight, bias = init_params(kp, in_features, out_features)

    y_ref = x @ weight.T + bias

    # 1) Default K-resident path: x chunk resident across the N sweep.
    y = memory_efficient_linear(x, weight, bias, chunk_size=128)
    y = jax.block_until_ready(y)
    assert y.shape == (batch, out_features)
    assert jnp.allclose(y, y_ref, atol=1e-4, rtol=1e-4)

    # 2) Forced K-tiled path, f32 output -> accumulate directly into o_ref;
    #    tk=384 leaves a ragged last K tile (exercises in-kernel masking).
    y2 = memory_efficient_linear(x, weight, bias, chunk_size=128,
                                 tk=384, tn=128)
    y2 = jax.block_until_ready(y2)
    assert jnp.allclose(y2, y_ref, atol=1e-4, rtol=1e-4)

    # 3) bf16-at-rest activations/weights (no wrapper-side casts), K-tiled
    #    path with the f32 scratch accumulator (bf16 output).
    xb = x.astype(jnp.bfloat16)
    wb = weight.astype(jnp.bfloat16)
    y3 = memory_efficient_linear(xb, wb, bias, chunk_size=128, tk=256,
                                 out_dtype=jnp.bfloat16)
    y3 = jax.block_until_ready(y3)
    assert jnp.allclose(y3.astype(jnp.float32), y_ref, atol=5e-2, rtol=5e-2)

    print("KERNEL_OK")
</pallas_src>

<mosaic_0001>
module attributes {stable_mosaic.version = 11 : i64} {
  func.func @_linear_resident_kernel(%arg0: i32, %arg1: i32, %arg2: memref<128x512xf32, #tpu.memory_space<vmem>>, %arg3: memref<256x512xf32, #tpu.memory_space<vmem>>, %arg4: memref<1x256xf32, #tpu.memory_space<vmem>>, %arg5: memref<128x256xf32, #tpu.memory_space<vmem>>) attributes {dimension_semantics = [#tpu.dimension_semantics<parallel>, #tpu.dimension_semantics<parallel>], iteration_bounds = array<i64: 3, 1>, scalar_prefetch = 0 : i64, scratch_operands = 0 : i64, tpu.core_type = #tpu.core_type<tc>, window_params = [{transform_indices = @transform_0, window_bounds = array<i64: 128, 512>}, {transform_indices = @transform_1, window_bounds = array<i64: 256, 512>}, {transform_indices = @transform_2, window_bounds = array<i64: 1, 256>}, {transform_indices = @transform_3, window_bounds = array<i64: 128, 256>}]} {
    %c0 = arith.constant 0 : index
    %c0_0 = arith.constant 0 : index
    %0 = vector.load %arg2[%c0, %c0_0] : memref<128x512xf32, #tpu.memory_space<vmem>>, vector<128x512xf32>
    %c0_1 = arith.constant 0 : index
    %c0_2 = arith.constant 0 : index
    %1 = vector.load %arg3[%c0_1, %c0_2] : memref<256x512xf32, #tpu.memory_space<vmem>>, vector<256x512xf32>
    %cst = arith.constant dense<0.000000e+00> : vector<128x256xf32>
    %2 = tpu.matmul %0, %1, %cst {dimension_numbers = #tpu.dot_dimension_numbers<[1], [1], [0], [0], [0, 0, 1, 0], [], []>} : vector<128x512xf32>, vector<256x512xf32>, vector<128x256xf32> -> vector<128x256xf32>
    %c0_3 = arith.constant 0 : index
    %c0_4 = arith.constant 0 : index
    %3 = vector.load %arg4[%c0_3, %c0_4] : memref<1x256xf32, #tpu.memory_space<vmem>>, vector<1x256xf32>
    %4 = vector.broadcast %3 : vector<1x256xf32> to vector<128x256xf32>
    %5 = arith.addf %2, %4 : vector<128x256xf32>
    %c0_5 = arith.constant 0 : index
    %c0_6 = arith.constant 0 : index
    %6 = vector.load %arg5[%c0_5, %c0_6] : memref<128x256xf32, #tpu.memory_space<vmem>>, vector<128x256xf32>
    tpu.vector_store %arg5[%c0_5, %c0_6], %5 {strides = array<i32>} : memref<128x256xf32, #tpu.memory_space<vmem>>, vector<128x256xf32>,
    return
  }
  func.func @transform_0(%arg0: i32, %arg1: i32) -> (i32, i32) {
    %c0_i32 = arith.constant 0 : i32
    %c0_i32_0 = arith.constant 0 : i32
    return %arg0, %c0_i32 : i32, i32
  }
  func.func @transform_1(%arg0: i32, %arg1: i32) -> (i32, i32) {
    %c0_i32 = arith.constant 0 : i32
    %c0_i32_0 = arith.constant 0 : i32
    return %arg1, %c0_i32 : i32, i32
  }
  func.func @transform_2(%arg0: i32, %arg1: i32) -> (i32, i32) {
    %c0_i32 = arith.constant 0 : i32
    %c0_i32_0 = arith.constant 0 : i32
    return %c0_i32, %arg1 : i32, i32
  }
  func.func @transform_3(%arg0: i32, %arg1: i32) -> (i32, i32) {
    %c0_i32 = arith.constant 0 : i32
    return %arg0, %arg1 : i32, i32
  }
}

</mosaic_0001>

<llo_original>
// kernel: memory_efficient_linear.1
$region0: #{memory_efficient_linear.1}
  #allocation0 [shape = 'u32[]', space=smem, size = 0x4, offset = 0x4, fixed_abs, tag = 'smem constant byte address 0x4 - core index']
  #allocation1 [shape = 'u32[144,128]{1,0:T(1,128)}', space=vmem, size = 0x12000, scoped, tag = 'internal scratch']
  %s0 = inlined_call_operand.hbm [shape: f32[300,512], index: 0, kind: input, shape index: {}]
  %s1 = inlined_call_operand.hbm [shape: f32[256,512], index: 1, kind: input, shape index: {}]
  %s2 = inlined_call_operand.vmem [shape: f32[1,256], index: 2, kind: input, shape index: {}]
  %s3 = inlined_call_operand.hbm [shape: f32[300,256], index: 3, kind: output, shape index: {}]
  %s4 = sld [smem:[#allocation0]]
  $region53: #{memory_efficient_linear.1} parent=0
    _
  %s6 = ssub.s32 1, %s4
  %s7 = scalar_select 0, %s6, %s4
  $region1: #{memory_efficient_linear.1} parent=0
    #allocation2 [shape = 'u8[524288]{0}', space=vmem, size = 0x80000, scoped, tag = 'input window, operand 0']
    #allocation3 [shape = 's32[2]{0}', space=sflag, size = 0x8, scoped, tag = 'scoped memory for memory_efficient_linear.1']
    #allocation4 [shape = 's32[2]{0}', space=sflag, size = 0x8, scoped, tag = 'scoped memory for memory_efficient_linear.1']
    #allocation5 [shape = 'u8[524288]{0}', space=vmem, size = 0x80000, scoped, tag = 'input window, operand 1, single buffered']
    #allocation6 [shape = 's32[1]{0}', space=sflag, size = 0x4, scoped, tag = 'scoped memory for memory_efficient_linear.1']
    #allocation7 [shape = 'u8[262144]{0}', space=vmem, size = 0x40000, scoped, tag = 'output window, operand 0']
    %8 = vsyncpa [#allocation3], 0
    %s9 = scalar_lea.sflag [#allocation3], 1
    %10 = vsyncpa %s9, 0
    %11 = vsyncpa [#allocation6], 0
    %12 = vsyncpa [#allocation4], 0
    %s13 = scalar_lea.sflag [#allocation4], 1
    %14 = vsyncpa %s13, 0
    loop: start=0, step=1, limit=5
    $region2: #{memory_efficient_linear.1} parent=1 // loop_pre_header
      _
    $region3: #{memory_efficient_linear.1} parent=1 // loop_header
      %s16 = sphi 0, %s20
      %p17 = scmp.ge.s32.totalorder %s16, 5
      %s23 = sphi 0, %s35
      %s24 = sphi 0, %s31
      %s25 = sphi 0, %s23
      %s26 = sphi 0, %s24
      %s27 = sphi 0, %s25
      %s28 = sphi 0, %s26
      %s38 = sphi 0, %s40
      %s41 = sphi 0, %s38
      %s42 = sphi 0, %s41
      %s58 = sphi 0, %s42
      %s64 = sphi 0, %s66
      %s67 = sphi 0, %s64
      %s68 = sphi 0, %s67
      %s84 = sphi 0, %s68
      %s90 = sphi 0, %s92
      %s93 = sphi 0, %s90
      %s94 = sphi 0, %s93
      %s110 = sphi 0, %s94
      %s118 = sphi 0, %s120
      %s121 = sphi 0, %s118
      %s122 = sphi 0, %s121
      %s138 = sphi 0, %s122
    $region4: #{memory_efficient_linear.1} parent=1 // loop_header_branch
      %19 = sbr.rel (%p17) target = $region8
    $region5: #{memory_efficient_linear.1} parent=1 // loop_body
      %s21 = ssub.s32 %s16, 1
      %s22 = ssub.s32 %s16, 2
      %s29 = sadd.s32 1, %s24
      %p30 = scmp.ge.s32.totalorder %s29, 1
      %s31 = scalar_select %p30, 0, %s29
      %s32 = sadd.s32 1, %s23
      %s33 = scalar_select %p30, %s32, %s23
      %p34 = scmp.ge.s32.totalorder %s33, 3
      %s35 = scalar_select %p34, 0, %s33
      %s36 = ssub.s32 %s23, %s35
      %p37 = scmp.eq.s32.totalorder %s36, 0
      %s39 = sadd.s32 %s38, 1
      %s40 = scalar_select %p37, %s38, %s39
      %p43 = pneg %p37
      %p44 = scmp.eq.s32.totalorder %s16, 2
      %p45 = por %p43, %p44
      %p46 = scmp.ne.s32.totalorder %s38, %s41
      %p47 = scmp.eq.s32.totalorder %s16, 0
      %p48 = por %p46, %p47
      %p49 = scmp.ne.s32.totalorder %s38, %s41
      %p50 = scmp.eq.s32.totalorder %s21, 2
      %p51 = por %p49, %p50
      %p52 = scmp.ne.s32.totalorder %s41, %s42
      %p53 = scmp.eq.s32.totalorder %s21, 0
      %p54 = por %p52, %p53
      %p55 = scmp.ne.s32.totalorder %s41, %s42
      %p56 = scmp.eq.s32.totalorder %s22, 2
      %p57 = por %p55, %p56
      %p59 = scmp.ne.s32.totalorder %s42, %s58
      %p60 = scmp.eq.s32.totalorder %s22, 0
      %p61 = por %p59, %p60
      %s62 = ssub.s32 %s24, %s31
      %p63 = scmp.eq.s32.totalorder %s62, 0
      %s65 = sadd.s32 %s64, 1
      %s66 = scalar_select %p63, %s64, %s65
      %p69 = pneg %p63
      %p70 = scmp.eq.s32.totalorder %s16, 2
      %p71 = por %p69, %p70
      %p72 = scmp.ne.s32.totalorder %s64, %s67
      %p73 = scmp.eq.s32.totalorder %s16, 0
      %p74 = por %p72, %p73
      %p75 = scmp.ne.s32.totalorder %s64, %s67
      %p76 = scmp.eq.s32.totalorder %s21, 2
      %p77 = por %p75, %p76
      %p78 = scmp.ne.s32.totalorder %s67, %s68
      %p79 = scmp.eq.s32.totalorder %s21, 0
      %p80 = por %p78, %p79
      %p81 = scmp.ne.s32.totalorder %s67, %s68
      %p82 = scmp.eq.s32.totalorder %s22, 2
      %p83 = por %p81, %p82
      %p85 = scmp.ne.s32.totalorder %s68, %s84
      %p86 = scmp.eq.s32.totalorder %s22, 0
      %p87 = por %p85, %p86
      %s88 = ssub.s32 %s24, %s31
      %p89 = scmp.eq.s32.totalorder %s88, 0
      %s91 = sadd.s32 %s90, 1
      %s92 = scalar_select %p89, %s90, %s91
      %p95 = pneg %p89
      %p96 = scmp.eq.s32.totalorder %s16, 2
      %p97 = por %p95, %p96
      %p98 = scmp.ne.s32.totalorder %s90, %s93
      %p99 = scmp.eq.s32.totalorder %s16, 0
      %p100 = por %p98, %p99
      %p101 = scmp.ne.s32.totalorder %s90, %s93
      %p102 = scmp.eq.s32.totalorder %s21, 2
      %p103 = por %p101, %p102
      %p104 = scmp.ne.s32.totalorder %s93, %s94
      %p105 = scmp.eq.s32.totalorder %s21, 0
      %p106 = por %p104, %p105
      %p107 = scmp.ne.s32.totalorder %s93, %s94
      %p108 = scmp.eq.s32.totalorder %s22, 2
      %p109 = por %p107, %p108
      %p111 = scmp.ne.s32.totalorder %s94, %s110
      %p112 = scmp.eq.s32.totalorder %s22, 0
      %p113 = por %p111, %p112
      %s114 = ssub.s32 %s23, %s35
      %s115 = ssub.s32 %s24, %s31
      %s116 = sor.u32 %s114, %s115
      %p117 = scmp.eq.s32.totalorder %s116, 0
      %s119 = sadd.s32 %s118, 1
      %s120 = scalar_select %p117, %s118, %s119
      %p123 = pneg %p117
      %p124 = scmp.eq.s32.totalorder %s16, 2
      %p125 = por %p123, %p124
      %p126 = scmp.ne.s32.totalorder %s118, %s121
      %p127 = scmp.eq.s32.totalorder %s16, 0
      %p128 = por %p126, %p127
      %p129 = scmp.ne.s32.totalorder %s118, %s121
      %p130 = scmp.eq.s32.totalorder %s21, 2
      %p131 = por %p129, %p130
      %p132 = scmp.ne.s32.totalorder %s121, %s122
      %p133 = scmp.eq.s32.totalorder %s21, 0
      %p134 = por %p132, %p133
      %p135 = scmp.ne.s32.totalorder %s121, %s122
      %p136 = scmp.eq.s32.totalorder %s22, 2
      %p137 = por %p135, %p136
      %p139 = scmp.ne.s32.totalorder %s122, %s138
      %p140 = scmp.eq.s32.totalorder %s22, 0
      %p141 = por %p139, %p140
      %p142 = scmp.le.s32.totalorder 1, %s16
      %p143 = scmp.lt.s32.totalorder %s16, 4
      %p144 = pnand %p142, %p143
      %p145 = pneg %p144
      // Predicated region
      $region9: #{memory_efficient_linear.1} parent=5 // pred_check
        _
      $region10: #{memory_efficient_linear.1} parent=5 // pred_check_branch
        %147 = sbr.rel (%p144) target = $region12
      $region11: #{memory_efficient_linear.1} parent=5 // pred_region
        %s148 = ssub.s32 %s16, 1
        // Predicated region
        $region13: #{memory_efficient_linear.1} parent=11 // pred_check
          %p149 = pneg %p80
        $region14: #{memory_efficient_linear.1} parent=11 // pred_check_branch
          %151 = sbr.rel (%p149) target = $region16
        $region15: #{memory_efficient_linear.1} parent=11 // pred_region
          %s152 = smul.u32 32, %s26
          %s154 = ssub.s32 16384, 16384
          %155 = vsyncadd [#allocation6], %s154
          %s156 = smul.addr %s152, 4
          %s157 = smul.addr %s156, 128
          %s158 = scalar_lea.hbm %s1, %s157
          %s159 = sshll.u32 [#allocation5], 4
          %s160 = int_to_ptr.vmem [resolvable:$true] %s159
          %165 = dma.hbm_to_vmem [thread:$0]  %s158, 16384, %s160, [#allocation6], 512, 512, 32
        $region16: #{memory_efficient_linear.1} parent=11 // pred_fallthru
          _
        // Predicated region
        $region17: #{memory_efficient_linear.1} parent=11 // pred_check
          %p166 = pneg %p106
        $region18: #{memory_efficient_linear.1} parent=11 // pred_check_branch
          %168 = sbr.rel (%p166) target = $region20
        $region19: #{memory_efficient_linear.1} parent=11 // pred_region
          %s169 = smul.u32 2, %s26
          %p170 = scmp.lt.s32.totalorder %s169, 1
          %s171 = scalar_select %p170, %s169, 1
          %s172 = scalar_lea.vmem %s2, %s171
          %s173 = smul.u32 2, %s26
        $region20: #{memory_efficient_linear.1} parent=11 // pred_fallthru
          _
      $region12: #{memory_efficient_linear.1} parent=5 // pred_fallthru
        _
      %p174 = scmp.lt.s32.totalorder %s16, 3
      // Predicated region
      $region21: #{memory_efficient_linear.1} parent=5 // pred_check
        %p175 = pneg %p174
      $region22: #{memory_efficient_linear.1} parent=5 // pred_check_branch
        %177 = sbr.rel (%p175) target = $region24
      $region23: #{memory_efficient_linear.1} parent=5 // pred_region
        // Predicated region
        $region25: #{memory_efficient_linear.1} parent=23 // pred_check
          %p178 = pneg %p48
        $region26: #{memory_efficient_linear.1} parent=23 // pred_check_branch
          %180 = sbr.rel (%p178) target = $region28
        $region27: #{memory_efficient_linear.1} parent=23 // pred_region
          %s181 = sand.u32 %s38, 1
          %s182 = scalar_lea.sflag [#allocation3], %s181
          %s183 = sand.u32 %s38, 1
          %s184 = smul.addr %s183, 512
          %s185 = scalar_lea.vmem [#allocation2], %s184
          %s186 = smul.u32 16, %s23
          %s187 = ssub.s32 38, %s186
          %p188 = scmp.lt.s32.totalorder %s187, 16
          %s189 = scalar_select %p188, %s187, 16
          %s190 = smul.u32 128, %s189
          %s191 = smul.u32 %s190, 4
          %s193 = ssub.s32 8192, %s191
          %194 = vsyncadd %s182, %s193
          %p195 = scmp.ne.s32.totalorder 0, %s191
          %s196 = smul.addr %s186, 4
          %s197 = smul.addr %s196, 128
          %s198 = scalar_lea.hbm %s0, %s197
          %s199 = smul.u32 32, %s189
          %s200 = sshll.u32 %s185, 4
          %s201 = int_to_ptr.vmem [resolvable:$true] %s200
          %s202 = sshll.u32 %s199, 4
          %206 = dma.hbm_to_vmem [thread:$0]  (%p195), %s198, %s202, %s201, %s182, 512, 512, 32
        $region28: #{memory_efficient_linear.1} parent=23 // pred_fallthru
          _
      $region24: #{memory_efficient_linear.1} parent=5 // pred_fallthru
        _
      %p207 = scmp.le.s32.totalorder 1, %s16
      %p208 = scmp.lt.s32.totalorder %s16, 4
      %p209 = pnand %p207, %p208
      %p210 = pneg %p209
      // Predicated region
      $region29: #{memory_efficient_linear.1} parent=5 // pred_check
        _
      $region30: #{memory_efficient_linear.1} parent=5 // pred_check_branch
        %212 = sbr.rel (%p209) target = $region32
      $region31: #{memory_efficient_linear.1} parent=5 // pred_region
        %s213 = ssub.s32 %s16, 1
        %s214 = sand.u32 %s41, 1
        %s215 = scalar_lea.sflag [#allocation3], %s214
        %s216 = sand.u32 %s41, 1
        %s217 = smul.addr %s216, 512
        %s218 = scalar_lea.vmem [#allocation2], %s217
        // Predicated region
        $region33: #{memory_efficient_linear.1} parent=31 // pred_check
          %p219 = pneg %p54
        $region34: #{memory_efficient_linear.1} parent=31 // pred_check_branch
          %221 = sbr.rel (%p219) target = $region36
        $region35: #{memory_efficient_linear.1} parent=31 // pred_region
          %222 = dma.done %s215, 8192
        $region36: #{memory_efficient_linear.1} parent=31 // pred_fallthru
          _
        // Predicated region
        $region37: #{memory_efficient_linear.1} parent=31 // pred_check
          %p223 = pneg %p80
        $region38: #{memory_efficient_linear.1} parent=31 // pred_check_branch
          %225 = sbr.rel (%p223) target = $region40
        $region39: #{memory_efficient_linear.1} parent=31 // pred_region
          %226 = dma.done [#allocation6], 16384
        $region40: #{memory_efficient_linear.1} parent=31 // pred_fallthru
          _
        %s227 = sand.u32 %s41, 1
        %s228 = scalar_lea.sflag [#allocation3], %s227
        %s229 = sand.u32 %s41, 1
        %s230 = smul.addr %s229, 512
        %s231 = scalar_lea.vmem [#allocation2], %s230
        %p232 = pneg %p54
        %p233 = pneg %p51
        %p234 = pneg %p80
        %p235 = pneg %p77
        %s236 = smul.u32 2, %s26
        %p237 = scmp.lt.s32.totalorder %s236, 1
        %s238 = scalar_select %p237, %s236, 1
        %s239 = scalar_lea.vmem %s2, %s238
        %p240 = pneg %p106
        %p241 = pneg %p103
        %p242 = pneg %p134
        %p243 = pneg %p131
        %s244 = sand.u32 %s121, 1
        %s245 = scalar_lea.sflag [#allocation4], %s244
        %s246 = sand.u32 %s121, 1
        %s247 = smul.addr %s246, 256
        %s248 = scalar_lea.vmem [#allocation7], %s247
        %s249 = smul.u32 16, %s25
        %s250 = ssub.s32 38, %s249
        %p251 = scmp.lt.s32.totalorder %s250, 16
        %s252 = scalar_select %p251, %s250, 16
        %s253 = smul.u32 128, %s252
        %s254 = smul.u32 %s253, 4
        %s255 = smul.u32 32, %s26
        %s256 = smul.u32 2, %s26
        %p257 = scmp.lt.s32.totalorder %s256, 1
        %s258 = scalar_select %p257, %s256, 1
        %s259 = scalar_lea.vmem %s2, %s258
        %s260 = smul.u32 2, %s26
        %s261 = smul.u32 16, %s25
        %s262 = smul.u32 2, %s26
        %s263 = ssub.s32 38, %s261
        %p264 = scmp.lt.s32.totalorder %s263, 16
        %s265 = scalar_select %p264, %s263, 16
        %s266 = smul.u32 128, %s265
        %s267 = smul.u32 %s266, 2
        %v268 = vld [vmem:[%s218] sm:$0xff]
        %v269 = vld [vmem:[%s218 + $0x8] sm:$0xff]
        %v270 = vld [vmem:[%s218 + $0x10] sm:$0xff]
        %v271 = vld [vmem:[%s218 + $0x18] sm:$0xff]
        %v272 = vld [vmem:[%s218 + $0x20] sm:$0xff]
        %v273 = vld [vmem:[%s218 + $0x28] sm:$0xff]
        %v274 = vld [vmem:[%s218 + $0x30] sm:$0xff]
        %v275 = vld [vmem:[%s218 + $0x38] sm:$0xff]
        %v276 = vld [vmem:[%s218 + $0x40] sm:$0xff]
        %v277 = vld [vmem:[%s218 + $0x48] sm:$0xff]
        %v278 = vld [vmem:[%s218 + $0x50] sm:$0xff]
        %v279 = vld [vmem:[%s218 + $0x58] sm:$0xff]
        %v280 = vld [vmem:[%s218 + $0x60] sm:$0xff]
        %v281 = vld [vmem:[%s218 + $0x68] sm:$0xff]
        %v282 = vld [vmem:[%s218 + $0x70] sm:$0xff]
        %v283 = vld [vmem:[%s218 + $0x78] sm:$0xff]
        %v284 = vld [vmem:[%s218 + $0x80] sm:$0xff]
        %v285 = vld [vmem:[%s218 + $0x88] sm:$0xff]
        %v286 = vld [vmem:[%s218 + $0x90] sm:$0xff]
        %v287 = vld [vmem:[%s218 + $0x98] sm:$0xff]
        %v288 = vld [vmem:[%s218 + $0xa0] sm:$0xff]
        %v289 = vld [vmem:[%s218 + $0xa8] sm:$0xff]
        %v290 = vld [vmem:[%s218 + $0xb0] sm:$0xff]
        %v291 = vld [vmem:[%s218 + $0xb8] sm:$0xff]
        %v292 = vld [vmem:[%s218 + $0xc0] sm:$0xff]
        %v293 = vld [vmem:[%s218 + $0xc8] sm:$0xff]
        %v294 = vld [vmem:[%s218 + $0xd0] sm:$0xff]
        %v295 = vld [vmem:[%s218 + $0xd8] sm:$0xff]
        %v296 = vld [vmem:[%s218 + $0xe0] sm:$0xff]
        %v297 = vld [vmem:[%s218 + $0xe8] sm:$0xff]
        %v298 = vld [vmem:[%s218 + $0xf0] sm:$0xff]
        %v299 = vld [vmem:[%s218 + $0xf8] sm:$0xff]
        %v300 = vld [vmem:[%s218 + $0x100] sm:$0xff]
        %v301 = vld [vmem:[%s218 + $0x108] sm:$0xff]
        %v302 = vld [vmem:[%s218 + $0x110] sm:$0xff]
        %v303 = vld [vmem:[%s218 + $0x118] sm:$0xff]
        %v304 = vld [vmem:[%s218 + $0x120] sm:$0xff]
        %v305 = vld [vmem:[%s218 + $0x128] sm:$0xff]
        %v306 = vld [vmem:[%s218 + $0x130] sm:$0xff]
        %v307 = vld [vmem:[%s218 + $0x138] sm:$0xff]
        %v308 = vld [vmem:[%s218 + $0x140] sm:$0xff]
        %v309 = vld [vmem:[%s218 + $0x148] sm:$0xff]
        %v310 = vld [vmem:[%s218 + $0x150] sm:$0xff]
        %v311 = vld [vmem:[%s218 + $0x158] sm:$0xff]
        %v312 = vld [vmem:[%s218 + $0x160] sm:$0xff]
        %v313 = vld [vmem:[%s218 + $0x168] sm:$0xff]
        %v314 = vld [vmem:[%s218 + $0x170] sm:$0xff]
        %v315 = vld [vmem:[%s218 + $0x178] sm:$0xff]
        %v316 = vld [vmem:[%s218 + $0x180] sm:$0xff]
        %v317 = vld [vmem:[%s218 + $0x188] sm:$0xff]
        %v318 = vld [vmem:[%s218 + $0x190] sm:$0xff]
        %v319 = vld [vmem:[%s218 + $0x198] sm:$0xff]
        %v320 = vld [vmem:[%s218 + $0x1a0] sm:$0xff]
        %v321 = vld [vmem:[%s218 + $0x1a8] sm:$0xff]
        %v322 = vld [vmem:[%s218 + $0x1b0] sm:$0xff]
        %v323 = vld [vmem:[%s218 + $0x1b8] sm:$0xff]
        %v324 = vld [vmem:[%s218 + $0x1c0] sm:$0xff]
        %v325 = vld [vmem:[%s218 + $0x1c8] sm:$0xff]
        %v326 = vld [vmem:[%s218 + $0x1d0] sm:$0xff]
        %v327 = vld [vmem:[%s218 + $0x1d8] sm:$0xff]
        %v328 = vld [vmem:[%s218 + $0x1e0] sm:$0xff]
        %v329 = vld [vmem:[%s218 + $0x1e8] sm:$0xff]
        %v330 = vld [vmem:[%s218 + $0x1f0] sm:$0xff]
        %v331 = vld [vmem:[%s218 + $0x1f8] sm:$0xff]
        %v332 = vld [vmem:[#allocation5] sm:$0xff]
        %v333 = vld [vmem:[#allocation5 + $0x8] sm:$0xff]
        %v334 = vld [vmem:[#allocation5 + $0x10] sm:$0xff]
        %v335 = vld [vmem:[#allocation5 + $0x18] sm:$0xff]
        %v336 = vld [vmem:[#allocation5 + $0x20] sm:$0xff]
        %v337 = vld [vmem:[#allocation5 + $0x28] sm:$0xff]
        %v338 = vld [vmem:[#allocation5 + $0x30] sm:$0xff]
        %v339 = vld [vmem:[#allocation5 + $0x38] sm:$0xff]
        %v340 = vld [vmem:[#allocation5 + $0x40] sm:$0xff]
        %v341 = vld [vmem:[#allocation5 + $0x48] sm:$0xff]
        %v342 = vld [vmem:[#allocation5 + $0x50] sm:$0xff]
        %v343 = vld [vmem:[#allocation5 + $0x58] sm:$0xff]
        %v344 = vld [vmem:[#allocation5 + $0x60] sm:$0xff]
        %v345 = vld [vmem:[#allocation5 + $0x68] sm:$0xff]
        %v346 = vld [vmem:[#allocation5 + $0x70] sm:$0xff]
        %v347 = vld [vmem:[#allocation5 + $0x78] sm:$0xff]
        %v348 = vld [vmem:[#allocation5 + $0x80] sm:$0xff]
        %v349 = vld [vmem:[#allocation5 + $0x88] sm:$0xff]
        %v350 = vld [vmem:[#allocation5 + $0x90] sm:$0xff]
        %v351 = vld [vmem:[#allocation5 + $0x98] sm:$0xff]
        %v352 = vld [vmem:[#allocation5 + $0xa0] sm:$0xff]
        %v353 = vld [vmem:[#allocation5 + $0xa8] sm:$0xff]
        %v354 = vld [vmem:[#allocation5 + $0xb0] sm:$0xff]
        %v355 = vld [vmem:[#allocation5 + $0xb8] sm:$0xff]
        %v356 = vld [vmem:[#allocation5 + $0xc0] sm:$0xff]
        %v357 = vld [vmem:[#allocation5 + $0xc8] sm:$0xff]
        %v358 = vld [vmem:[#allocation5 + $0xd0] sm:$0xff]
        %v359 = vld [vmem:[#allocation5 + $0xd8] sm:$0xff]
        %v360 = vld [vmem:[#allocation5 + $0xe0] sm:$0xff]
        %v361 = vld [vmem:[#allocation5 + $0xe8] sm:$0xff]
        %v362 = vld [vmem:[#allocation5 + $0xf0] sm:$0xff]
        %v363 = vld [vmem:[#allocation5 + $0xf8] sm:$0xff]
        %v364 = vld [vmem:[#allocation5 + $0x100] sm:$0xff]
        %v365 = vld [vmem:[#allocation5 + $0x108] sm:$0xff]
        %v366 = vld [vmem:[#allocation5 + $0x110] sm:$0xff]
        %v367 = vld [vmem:[#allocation5 + $0x118] sm:$0xff]
        %v368 = vld [vmem:[#allocation5 + $0x120] sm:$0xff]
        %v369 = vld [vmem:[#allocation5 + $0x128] sm:$0xff]
        %v370 = vld [vmem:[#allocation5 + $0x130] sm:$0xff]
        %v371 = vld [vmem:[#allocation5 + $0x138] sm:$0xff]
        %v372 = vld [vmem:[#allocation5 + $0x140] sm:$0xff]
        %v373 = vld [vmem:[#allocation5 + $0x148] sm:$0xff]
        %v374 = vld [vmem:[#allocation5 + $0x150] sm:$0xff]
        %v375 = vld [vmem:[#allocation5 + $0x158] sm:$0xff]
        %v376 = vld [vmem:[#allocation5 + $0x160] sm:$0xff]
        %v377 = vld [vmem:[#allocation5 + $0x168] sm:$0xff]
        %v378 = vld [vmem:[#allocation5 + $0x170] sm:$0xff]
        %v379 = vld [vmem:[#allocation5 + $0x178] sm:$0xff]
        %v380 = vld [vmem:[#allocation5 + $0x180] sm:$0xff]
        %v381 = vld [vmem:[#allocation5 + $0x188] sm:$0xff]
        %v382 = vld [vmem:[#allocation5 + $0x190] sm:$0xff]
        %v383 = vld [vmem:[#allocation5 + $0x198] sm:$0xff]
        %v384 = vld [vmem:[#allocation5 + $0x1a0] sm:$0xff]
        %v385 = vld [vmem:[#allocation5 + $0x1a8] sm:$0xff]
        %v386 = vld [vmem:[#allocation5 + $0x1b0] sm:$0xff]
        %v387 = vld [vmem:[#allocation5 + $0x1b8] sm:$0xff]
        %v388 = vld [vmem:[#allocation5 + $0x1c0] sm:$0xff]
        %v389 = vld [vmem:[#allocation5 + $0x1c8] sm:$0xff]
        %v390 = vld [vmem:[#allocation5 + $0x1d0] sm:$0xff]
        %v391 = vld [vmem:[#allocation5 + $0x1d8] sm:$0xff]
        %v392 = vld [vmem:[#allocation5 + $0x1e0] sm:$0xff]
        %v393 = vld [vmem:[#allocation5 + $0x1e8] sm:$0xff]
        %v394 = vld [vmem:[#allocation5 + $0x1f0] sm:$0xff]
        %v395 = vld [vmem:[#allocation5 + $0x1f8] sm:$0xff]
        %v396 = vld [vmem:[#allocation5 + $0x200] sm:$0xff]
        %v397 = vld [vmem:[#allocation5 + $0x208] sm:$0xff]
        %v398 = vld [vmem:[#allocation5 + $0x210] sm:$0xff]
        %v399 = vld [vmem:[#allocation5 + $0x218] sm:$0xff]
        %v400 = vld [vmem:[#allocation5 + $0x220] sm:$0xff]
        %v401 = vld [vmem:[#allocation5 + $0x228] sm:$0xff]
        %v402 = vld [vmem:[#allocation5 + $0x230] sm:$0xff]
        %v403 = vld [vmem:[#allocation5 + $0x238] sm:$0xff]
        %v404 = vld [vmem:[#allocation5 + $0x240] sm:$0xff]
        %v405 = vld [vmem:[#allocation5 + $0x248] sm:$0xff]
        %v406 = vld [vmem:[#allocation5 + $0x250] sm:$0xff]
        %v407 = vld [vmem:[#allocation5 + $0x258] sm:$0xff]
        %v408 = vld [vmem:[#allocation5 + $0x260] sm:$0xff]
        %v409 = vld [vmem:[#allocation5 + $0x268] sm:$0xff]
        %v410 = vld [vmem:[#allocation5 + $0x270] sm:$0xff]
        %v411 = vld [vmem:[#allocation5 + $0x278] sm:$0xff]
        %v412 = vld [vmem:[#allocation5 + $0x280] sm:$0xff]
        %v413 = vld [vmem:[#allocation5 + $0x288] sm:$0xff]
        %v414 = vld [vmem:[#allocation5 + $0x290] sm:$0xff]
        %v415 = vld [vmem:[#allocation5 + $0x298] sm:$0xff]
        %v416 = vld [vmem:[#allocation5 + $0x2a0] sm:$0xff]
        %v417 = vld [vmem:[#allocation5 + $0x2a8] sm:$0xff]
        %v418 = vld [vmem:[#allocation5 + $0x2b0] sm:$0xff]
        %v419 = vld [vmem:[#allocation5 + $0x2b8] sm:$0xff]
        %v420 = vld [vmem:[#allocation5 + $0x2c0] sm:$0xff]
        %v421 = vld [vmem:[#allocation5 + $0x2c8] sm:$0xff]
        %v422 = vld [vmem:[#allocation5 + $0x2d0] sm:$0xff]
        %v423 = vld [vmem:[#allocation5 + $0x2d8] sm:$0xff]
        %v424 = vld [vmem:[#allocation5 + $0x2e0] sm:$0xff]
        %v425 = vld [vmem:[#allocation5 + $0x2e8] sm:$0xff]
        %v426 = vld [vmem:[#allocation5 + $0x2f0] sm:$0xff]
        %v427 = vld [vmem:[#allocation5 + $0x2f8] sm:$0xff]
        %v428 = vld [vmem:[#allocation5 + $0x300] sm:$0xff]
        %v429 = vld [vmem:[#allocation5 + $0x308] sm:$0xff]
        %v430 = vld [vmem:[#allocation5 + $0x310] sm:$0xff]
        %v431 = vld [vmem:[#allocation5 + $0x318] sm:$0xff]
        %v432 = vld [vmem:[#allocation5 + $0x320] sm:$0xff]
        %v433 = vld [vmem:[#allocation5 + $0x328] sm:$0xff]
        %v434 = vld [vmem:[#allocation5 + $0x330] sm:$0xff]
        %v435 = vld [vmem:[#allocation5 + $0x338] sm:$0xff]
        %v436 = vld [vmem:[#allocation5 + $0x340] sm:$0xff]
        %v437 = vld [vmem:[#allocation5 + $0x348] sm:$0xff]
        %v438 = vld [vmem:[#allocation5 + $0x350] sm:$0xff]
        %v439 = vld [vmem:[#allocation5 + $0x358] sm:$0xff]
        %v440 = vld [vmem:[#allocation5 + $0x360] sm:$0xff]
        %v441 = vld [vmem:[#allocation5 + $0x368] sm:$0xff]
        %v442 = vld [vmem:[#allocation5 + $0x370] sm:$0xff]
        %v443 = vld [vmem:[#allocation5 + $0x378] sm:$0xff]
        %v444 = vld [vmem:[#allocation5 + $0x380] sm:$0xff]
        %v445 = vld [vmem:[#allocation5 + $0x388] sm:$0xff]
        %v446 = vld [vmem:[#allocation5 + $0x390] sm:$0xff]
        %v447 = vld [vmem:[#allocation5 + $0x398] sm:$0xff]
        %v448 = vld [vmem:[#allocation5 + $0x3a0] sm:$0xff]
        %v449 = vld [vmem:[#allocation5 + $0x3a8] sm:$0xff]
        %v450 = vld [vmem:[#allocation5 + $0x3b0] sm:$0xff]
        %v451 = vld [vmem:[#allocation5 + $0x3b8] sm:$0xff]
        %v452 = vld [vmem:[#allocation5 + $0x3c0] sm:$0xff]
        %v453 = vld [vmem:[#allocation5 + $0x3c8] sm:$0xff]
        %v454 = vld [vmem:[#allocation5 + $0x3d0] sm:$0xff]
        %v455 = vld [vmem:[#allocation5 + $0x3d8] sm:$0xff]
        %v456 = vld [vmem:[#allocation5 + $0x3e0] sm:$0xff]
        %v457 = vld [vmem:[#allocation5 + $0x3e8] sm:$0xff]
        %v458 = vld [vmem:[#allocation5 + $0x3f0] sm:$0xff]
        %v459 = vld [vmem:[#allocation5 + $0x3f8] sm:$0xff]
        %v460 = vld [vmem:[%s259] sm:$0x3]
        %v462 = vlaneseq
        %v463 = vshrl.u32 %v462, 7
        %v464 = vsub.s32 0, %v463
        %v465 = vrot.slane %v460, %v464
        %v466 = vlaneseq
        %v467 = vshrl.u32 %v466, 7
        %v468 = vsub.s32 1, %v467
        %v469 = vrot.slane %v460, %v468
        %472 = vmatprep.subr.mxu0 %v393
        %473 = vmatpush1.xpose.msra.mxu0 %v392
        %474 = vmatprep.subr.mxu0 %v389
        %475 = vmatpush1.xpose.msra.mxu0 %v388
        %476 = vmatprep.subr.mxu0 %v385
        %477 = vmatpush1.xpose.msra.mxu0 %v384
        %478 = vmatprep.subr.mxu0 %v381
        %479 = vmatpush1.xpose.msra.mxu0 %v380
        %480 = vmatprep.subr.mxu0 %v377
        %481 = vmatpush1.xpose.msra.mxu0 %v376
        %482 = vmatprep.subr.mxu0 %v373
        %483 = vmatpush1.xpose.msra.mxu0 %v372
        %484 = vmatprep.subr.mxu0 %v369
        %485 = vmatpush1.xpose.msra.mxu0 %v368
        %486 = vmatprep.subr.mxu0 %v365
        %487 = vmatpush1.xpose.msra.mxu0 %v364
        %488 = vmatprep.subr.mxu0 %v361
        %489 = vmatpush1.xpose.msra.mxu0 %v360
        %490 = vmatprep.subr.mxu0 %v357
        %491 = vmatpush1.xpose.msra.mxu0 %v356
        %492 = vmatprep.subr.mxu0 %v353
        %493 = vmatpush1.xpose.msra.mxu0 %v352
        %494 = vmatprep.subr.mxu0 %v349
        %495 = vmatpush1.xpose.msra.mxu0 %v348
        %496 = vmatprep.subr.mxu0 %v345
        %497 = vmatpush1.xpose.msra.mxu0 %v344
        %498 = vmatprep.subr.mxu0 %v341
        %499 = vmatpush1.xpose.msra.mxu0 %v340
        %500 = vmatprep.subr.mxu0 %v337
        %501 = vmatpush1.xpose.msra.mxu0 %v336
        %502 = vmatprep.subr.mxu0 %v333
        %503 = vmatpush1.xpose.msra.mxu0 %v332
        %504 = vmatprep.subr.mxu0 %v457
        %505 = vmatpush2.xpose.msra.mxu0 %v456
        %506 = vmatprep.subr.mxu0 %v453
        %507 = vmatpush2.xpose.msra.mxu0 %v452
        %508 = vmatprep.subr.mxu0 %v449
        %509 = vmatpush2.xpose.msra.mxu0 %v448
        %510 = vmatprep.subr.mxu0 %v445
        %511 = vmatpush2.xpose.msra.mxu0 %v444
        %512 = vmatprep.subr.mxu0 %v441
        %513 = vmatpush2.xpose.msra.mxu0 %v440
        %514 = vmatprep.subr.mxu0 %v437
        %515 = vmatpush2.xpose.msra.mxu0 %v436
        %516 = vmatprep.subr.mxu0 %v433
        %517 = vmatpush2.xpose.msra.mxu0 %v432
        %518 = vmatprep.subr.mxu0 %v429
        %519 = vmatpush2.xpose.msra.mxu0 %v428
        %520 = vmatprep.subr.mxu0 %v425
        %521 = vmatpush2.xpose.msra.mxu0 %v424
        %522 = vmatprep.subr.mxu0 %v421
        %523 = vmatpush2.xpose.msra.mxu0 %v420
        %524 = vmatprep.subr.mxu0 %v417
        %525 = vmatpush2.xpose.msra.mxu0 %v416
        %526 = vmatprep.subr.mxu0 %v413
        %527 = vmatpush2.xpose.msra.mxu0 %v412
        %528 = vmatprep.subr.mxu0 %v409
        %529 = vmatpush2.xpose.msra.mxu0 %v408
        %530 = vmatprep.subr.mxu0 %v405
        %531 = vmatpush2.xpose.msra.mxu0 %v404
        %532 = vmatprep.subr.mxu0 %v401
        %533 = vmatpush2.xpose.msra.mxu0 %v400
        %534 = vmatprep.subr.mxu0 %v397
        %535 = vmatpush2.xpose.msra.mxu0 %v396
        %536 = vmatprep.mubr.f32.mxu0 %v269
        %537 = vmatmul.mubr.f32.gmra.mxu0 %v268
        %v538 = vpop.f32.mrf.mxu0
        %v539 = vadd.f32 %v465, %v538
        %v540 = vpop.f32.mrf.mxu0
        %v541 = vadd.f32 %v469, %v540
        %542 = vmatprep.mubr.f32.mxu0 %v273
        %543 = vmatmul.mubr.f32.gmra.mxu0 %v272
        %v544 = vpop.f32.mrf.mxu0
        %v545 = vadd.f32 %v465, %v544
        %v546 = vpop.f32.mrf.mxu0
        %v547 = vadd.f32 %v469, %v546
        %548 = vmatprep.mubr.f32.mxu0 %v277
        %549 = vmatmul.mubr.f32.gmra.mxu0 %v276
        %v550 = vpop.f32.mrf.mxu0
        %v551 = vadd.f32 %v465, %v550
        %v552 = vpop.f32.mrf.mxu0
        %v553 = vadd.f32 %v469, %v552
        %554 = vmatprep.mubr.f32.mxu0 %v281
        %555 = vmatmul.mubr.f32.gmra.mxu0 %v280
        %v556 = vpop.f32.mrf.mxu0
        %v557 = vadd.f32 %v465, %v556
        %v558 = vpop.f32.mrf.mxu0
        %v559 = vadd.f32 %v469, %v558
        %560 = vmatprep.mubr.f32.mxu0 %v285
        %561 = vmatmul.mubr.f32.gmra.mxu0 %v284
        %v562 = vpop.f32.mrf.mxu0
        %v563 = vadd.f32 %v465, %v562
        %v564 = vpop.f32.mrf.mxu0
        %v565 = vadd.f32 %v469, %v564
        %566 = vmatprep.mubr.f32.mxu0 %v289
        %567 = vmatmul.mubr.f32.gmra.mxu0 %v288
        %v568 = vpop.f32.mrf.mxu0
        %v569 = vadd.f32 %v465, %v568
        %v570 = vpop.f32.mrf.mxu0
        %v571 = vadd.f32 %v469, %v570
        %572 = vmatprep.mubr.f32.mxu0 %v293
        %573 = vmatmul.mubr.f32.gmra.mxu0 %v292
        %v574 = vpop.f32.mrf.mxu0
        %v575 = vadd.f32 %v465, %v574
        %v576 = vpop.f32.mrf.mxu0
        %v577 = vadd.f32 %v469, %v576
        %578 = vmatprep.mubr.f32.mxu0 %v297
        %579 = vmatmul.mubr.f32.gmra.mxu0 %v296
        %v580 = vpop.f32.mrf.mxu0
        %v581 = vadd.f32 %v465, %v580
        %v582 = vpop.f32.mrf.mxu0
        %v583 = vadd.f32 %v469, %v582
        %584 = vmatprep.mubr.f32.mxu0 %v301
        %585 = vmatmul.mubr.f32.gmra.mxu0 %v300
        %v586 = vpop.f32.mrf.mxu0
        %v587 = vadd.f32 %v465, %v586
        %v588 = vpop.f32.mrf.mxu0
        %v589 = vadd.f32 %v469, %v588
        %590 = vmatprep.mubr.f32.mxu0 %v305
        %591 = vmatmul.mubr.f32.gmra.mxu0 %v304
        %v592 = vpop.f32.mrf.mxu0
        %v593 = vadd.f32 %v465, %v592
        %v594 = vpop.f32.mrf.mxu0
        %v595 = vadd.f32 %v469, %v594
        %596 = vmatprep.mubr.f32.mxu0 %v309
        %597 = vmatmul.mubr.f32.gmra.mxu0 %v308
        %v598 = vpop.f32.mrf.mxu0
        %v599 = vadd.f32 %v465, %v598
        %v600 = vpop.f32.mrf.mxu0
        %v601 = vadd.f32 %v469, %v600
        %602 = vmatprep.mubr.f32.mxu0 %v313
        %603 = vmatmul.mubr.f32.gmra.mxu0 %v312
        %v604 = vpop.f32.mrf.mxu0
        %v605 = vadd.f32 %v465, %v604
        %v606 = vpop.f32.mrf.mxu0
        %v607 = vadd.f32 %v469, %v606
        %608 = vmatprep.mubr.f32.mxu0 %v317
        %609 = vmatmul.mubr.f32.gmra.mxu0 %v316
        %v610 = vpop.f32.mrf.mxu0
        %v611 = vadd.f32 %v465, %v610
        %v612 = vpop.f32.mrf.mxu0
        %v613 = vadd.f32 %v469, %v612
        %614 = vmatprep.mubr.f32.mxu0 %v321
        %615 = vmatmul.mubr.f32.gmra.mxu0 %v320
        %v616 = vpop.f32.mrf.mxu0
        %v617 = vadd.f32 %v465, %v616
        %v618 = vpop.f32.mrf.mxu0
        %v619 = vadd.f32 %v469, %v618
        %620 = vmatprep.mubr.f32.mxu0 %v325
        %621 = vmatmul.mubr.f32.gmra.mxu0 %v324
        %v622 = vpop.f32.mrf.mxu0
        %v623 = vadd.f32 %v465, %v622
        %v624 = vpop.f32.mrf.mxu0
        %v625 = vadd.f32 %v469, %v624
        %626 = vmatprep.mubr.f32.mxu0 %v329
        %627 = vmatmul.mubr.f32.gmra.mxu0 %v328
        %v628 = vpop.f32.mrf.mxu0
        %v629 = vadd.f32 %v465, %v628
        %v630 = vpop.f32.mrf.mxu0
        %v631 = vadd.f32 %v469, %v630
        %632 = vdwg.mxu0
        %633 = vmatprep.subr.mxu0 %v395
        %634 = vmatpush1.xpose.msra.mxu0 %v394
        %635 = vmatprep.subr.mxu0 %v391
        %636 = vmatpush1.xpose.msra.mxu0 %v390
        %637 = vmatprep.subr.mxu0 %v387
        %638 = vmatpush1.xpose.msra.mxu0 %v386
        %639 = vmatprep.subr.mxu0 %v383
        %640 = vmatpush1.xpose.msra.mxu0 %v382
        %641 = vmatprep.subr.mxu0 %v379
        %642 = vmatpush1.xpose.msra.mxu0 %v378
        %643 = vmatprep.subr.mxu0 %v375
        %644 = vmatpush1.xpose.msra.mxu0 %v374
        %645 = vmatprep.subr.mxu0 %v371
        %646 = vmatpush1.xpose.msra.mxu0 %v370
        %647 = vmatprep.subr.mxu0 %v367
        %648 = vmatpush1.xpose.msra.mxu0 %v366
        %649 = vmatprep.subr.mxu0 %v363
        %650 = vmatpush1.xpose.msra.mxu0 %v362
        %651 = vmatprep.subr.mxu0 %v359
        %652 = vmatpush1.xpose.msra.mxu0 %v358
        %653 = vmatprep.subr.mxu0 %v355
        %654 = vmatpush1.xpose.msra.mxu0 %v354
        %655 = vmatprep.subr.mxu0 %v351
        %656 = vmatpush1.xpose.msra.mxu0 %v350
        %657 = vmatprep.subr.mxu0 %v347
        %658 = vmatpush1.xpose.msra.mxu0 %v346
        %659 = vmatprep.subr.mxu0 %v343
        %660 = vmatpush1.xpose.msra.mxu0 %v342
        %661 = vmatprep.subr.mxu0 %v339
        %662 = vmatpush1.xpose.msra.mxu0 %v338
        %663 = vmatprep.subr.mxu0 %v335
        %664 = vmatpush1.xpose.msra.mxu0 %v334
        %665 = vmatprep.subr.mxu0 %v459
        %666 = vmatpush2.xpose.msra.mxu0 %v458
        %667 = vmatprep.subr.mxu0 %v455
        %668 = vmatpush2.xpose.msra.mxu0 %v454
        %669 = vmatprep.subr.mxu0 %v451
        %670 = vmatpush2.xpose.msra.mxu0 %v450
        %671 = vmatprep.subr.mxu0 %v447
        %672 = vmatpush2.xpose.msra.mxu0 %v446
        %673 = vmatprep.subr.mxu0 %v443
        %674 = vmatpush2.xpose.msra.mxu0 %v442
        %675 = vmatprep.subr.mxu0 %v439
        %676 = vmatpush2.xpose.msra.mxu0 %v438
        %677 = vmatprep.subr.mxu0 %v435
        %678 = vmatpush2.xpose.msra.mxu0 %v434
        %679 = vmatprep.subr.mxu0 %v431
        %680 = vmatpush2.xpose.msra.mxu0 %v430
        %681 = vmatprep.subr.mxu0 %v427
        %682 = vmatpush2.xpose.msra.mxu0 %v426
        %683 = vmatprep.subr.mxu0 %v423
        %684 = vmatpush2.xpose.msra.mxu0 %v422
        %685 = vmatprep.subr.mxu0 %v419
        %686 = vmatpush2.xpose.msra.mxu0 %v418
        %687 = vmatprep.subr.mxu0 %v415
        %688 = vmatpush2.xpose.msra.mxu0 %v414
        %689 = vmatprep.subr.mxu0 %v411
        %690 = vmatpush2.xpose.msra.mxu0 %v410
        %691 = vmatprep.subr.mxu0 %v407
        %692 = vmatpush2.xpose.msra.mxu0 %v406
        %693 = vmatprep.subr.mxu0 %v403
        %694 = vmatpush2.xpose.msra.mxu0 %v402
        %695 = vmatprep.subr.mxu0 %v399
        %696 = vmatpush2.xpose.msra.mxu0 %v398
        %697 = vmatprep.mubr.f32.mxu0 %v271
        %698 = vmatmul.mubr.f32.gmra.mxu0 %v270
        %v699 = vpop.f32.mrf.mxu0
        %v700 = vadd.f32 %v539, %v699
        %v701 = vpop.f32.mrf.mxu0
        %v702 = vadd.f32 %v541, %v701
        %703 = vmatprep.mubr.f32.mxu0 %v275
        %704 = vmatmul.mubr.f32.gmra.mxu0 %v274
        %v705 = vpop.f32.mrf.mxu0
        %v706 = vadd.f32 %v545, %v705
        %v707 = vpop.f32.mrf.mxu0
        %v708 = vadd.f32 %v547, %v707
        %709 = vmatprep.mubr.f32.mxu0 %v279
        %710 = vmatmul.mubr.f32.gmra.mxu0 %v278
        %v711 = vpop.f32.mrf.mxu0
        %v712 = vadd.f32 %v551, %v711
        %v713 = vpop.f32.mrf.mxu0
        %v714 = vadd.f32 %v553, %v713
        %715 = vmatprep.mubr.f32.mxu0 %v283
        %716 = vmatmul.mubr.f32.gmra.mxu0 %v282
        %v717 = vpop.f32.mrf.mxu0
        %v718 = vadd.f32 %v557, %v717
        %v719 = vpop.f32.mrf.mxu0
        %v720 = vadd.f32 %v559, %v719
        %721 = vmatprep.mubr.f32.mxu0 %v287
        %722 = vmatmul.mubr.f32.gmra.mxu0 %v286
        %v723 = vpop.f32.mrf.mxu0
        %v724 = vadd.f32 %v563, %v723
        %v725 = vpop.f32.mrf.mxu0
        %v726 = vadd.f32 %v565, %v725
        %727 = vmatprep.mubr.f32.mxu0 %v291
        %728 = vmatmul.mubr.f32.gmra.mxu0 %v290
        %v729 = vpop.f32.mrf.mxu0
        %v730 = vadd.f32 %v569, %v729
        %v731 = vpop.f32.mrf.mxu0
        %v732 = vadd.f32 %v571, %v731
        %733 = vmatprep.mubr.f32.mxu0 %v295
        %734 = vmatmul.mubr.f32.gmra.mxu0 %v294
        %v735 = vpop.f32.mrf.mxu0
        %v736 = vadd.f32 %v575, %v735
        %v737 = vpop.f32.mrf.mxu0
        %v738 = vadd.f32 %v577, %v737
        %739 = vmatprep.mubr.f32.mxu0 %v299
        %740 = vmatmul.mubr.f32.gmra.mxu0 %v298
        %v741 = vpop.f32.mrf.mxu0
        %v742 = vadd.f32 %v581, %v741
        %v743 = vpop.f32.mrf.mxu0
        %v744 = vadd.f32 %v583, %v743
        %745 = vmatprep.mubr.f32.mxu0 %v303
        %746 = vmatmul.mubr.f32.gmra.mxu0 %v302
        %v747 = vpop.f32.mrf.mxu0
        %v748 = vadd.f32 %v587, %v747
        %v749 = vpop.f32.mrf.mxu0
        %v750 = vadd.f32 %v589, %v749
        %751 = vmatprep.mubr.f32.mxu0 %v307
        %752 = vmatmul.mubr.f32.gmra.mxu0 %v306
        %v753 = vpop.f32.mrf.mxu0
        %v754 = vadd.f32 %v593, %v753
        %v755 = vpop.f32.mrf.mxu0
        %v756 = vadd.f32 %v595, %v755
        %757 = vmatprep.mubr.f32.mxu0 %v311
        %758 = vmatmul.mubr.f32.gmra.mxu0 %v310
        %v759 = vpop.f32.mrf.mxu0
        %v760 = vadd.f32 %v599, %v759
        %v761 = vpop.f32.mrf.mxu0
        %v762 = vadd.f32 %v601, %v761
        %763 = vmatprep.mubr.f32.mxu0 %v315
        %764 = vmatmul.mubr.f32.gmra.mxu0 %v314
        %v765 = vpop.f32.mrf.mxu0
        %v766 = vadd.f32 %v605, %v765
        %v767 = vpop.f32.mrf.mxu0
        %v768 = vadd.f32 %v607, %v767
        %769 = vmatprep.mubr.f32.mxu0 %v319
        %770 = vmatmul.mubr.f32.gmra.mxu0 %v318
        %v771 = vpop.f32.mrf.mxu0
        %v772 = vadd.f32 %v611, %v771
        %v773 = vpop.f32.mrf.mxu0
        %v774 = vadd.f32 %v613, %v773
        %775 = vmatprep.mubr.f32.mxu0 %v323
        %776 = vmatmul.mubr.f32.gmra.mxu0 %v322
        %v777 = vpop.f32.mrf.mxu0
        %v778 = vadd.f32 %v617, %v777
        %v779 = vpop.f32.mrf.mxu0
        %v780 = vadd.f32 %v619, %v779
        %781 = vmatprep.mubr.f32.mxu0 %v327
        %782 = vmatmul.mubr.f32.gmra.mxu0 %v326
        %v783 = vpop.f32.mrf.mxu0
        %v784 = vadd.f32 %v623, %v783
        %v785 = vpop.f32.mrf.mxu0
        %v786 = vadd.f32 %v625, %v785
        %787 = vmatprep.mubr.f32.mxu0 %v331
        %788 = vmatmul.mubr.f32.gmra.mxu0 %v330
        %v789 = vpop.f32.mrf.mxu0
        %v790 = vadd.f32 %v629, %v789
        %v791 = vpop.f32.mrf.mxu0
        %v792 = vadd.f32 %v631, %v791
        %793 = vdwg.mxu0
        %794 = vst [vmem:[%s248] sm:$0xff] %v700
        %795 = vst [vmem:[%s248 + $0x8] sm:$0xff] %v702
        %796 = vst [vmem:[%s248 + $0x10] sm:$0xff] %v706
        %797 = vst [vmem:[%s248 + $0x18] sm:$0xff] %v708
        %798 = vst [vmem:[%s248 + $0x20] sm:$0xff] %v712
        %799 = vst [vmem:[%s248 + $0x28] sm:$0xff] %v714
        %800 = vst [vmem:[%s248 + $0x30] sm:$0xff] %v718
        %801 = vst [vmem:[%s248 + $0x38] sm:$0xff] %v720
        %802 = vst [vmem:[%s248 + $0x40] sm:$0xff] %v724
        %803 = vst [vmem:[%s248 + $0x48] sm:$0xff] %v726
        %804 = vst [vmem:[%s248 + $0x50] sm:$0xff] %v730
        %805 = vst [vmem:[%s248 + $0x58] sm:$0xff] %v732
        %806 = vst [vmem:[%s248 + $0x60] sm:$0xff] %v736
        %807 = vst [vmem:[%s248 + $0x68] sm:$0xff] %v738
        %808 = vst [vmem:[%s248 + $0x70] sm:$0xff] %v742
        %809 = vst [vmem:[%s248 + $0x78] sm:$0xff] %v744
        %810 = vst [vmem:[%s248 + $0x80] sm:$0xff] %v748
        %811 = vst [vmem:[%s248 + $0x88] sm:$0xff] %v750
        %812 = vst [vmem:[%s248 + $0x90] sm:$0xff] %v754
        %813 = vst [vmem:[%s248 + $0x98] sm:$0xff] %v756
        %814 = vst [vmem:[%s248 + $0xa0] sm:$0xff] %v760
        %815 = vst [vmem:[%s248 + $0xa8] sm:$0xff] %v762
        %816 = vst [vmem:[%s248 + $0xb0] sm:$0xff] %v766
        %817 = vst [vmem:[%s248 + $0xb8] sm:$0xff] %v768
        %818 = vst [vmem:[%s248 + $0xc0] sm:$0xff] %v772
        %819 = vst [vmem:[%s248 + $0xc8] sm:$0xff] %v774
        %820 = vst [vmem:[%s248 + $0xd0] sm:$0xff] %v778
        %821 = vst [vmem:[%s248 + $0xd8] sm:$0xff] %v780
        %822 = vst [vmem:[%s248 + $0xe0] sm:$0xff] %v784
        %823 = vst [vmem:[%s248 + $0xe8] sm:$0xff] %v786
        %824 = vst [vmem:[%s248 + $0xf0] sm:$0xff] %v790
        %825 = vst [vmem:[%s248 + $0xf8] sm:$0xff] %v792
        %s826 = sand.u32 %s121, 1
        %s827 = scalar_lea.sflag [#allocation4], %s826
        %s828 = sand.u32 %s121, 1
        %s829 = smul.addr %s828, 256
        %s830 = scalar_lea.vmem [#allocation7], %s829
        // Predicated region
        $region41: #{memory_efficient_linear.1} parent=31 // pred_check
          %p831 = pneg %p131
        $region42: #{memory_efficient_linear.1} parent=31 // pred_check_branch
          %833 = sbr.rel (%p831) target = $region44
        $region43: #{memory_efficient_linear.1} parent=31 // pred_region
          %s834 = smul.u32 16, %s25
          %s835 = smul.u32 2, %s26
          %s836 = ssub.s32 38, %s834
          %p837 = scmp.lt.s32.totalorder %s836, 16
          %s838 = scalar_select %p837, %s836, 16
          %s839 = smul.u32 128, %s838
          %s840 = smul.u32 %s839, 2
          %s842 = ssub.s32 4096, %s840
          %843 = vsyncadd %s827, %s842
          %p844 = scmp.ne.s32.totalorder 0, %s840
          %s845 = smul.addr %s834, 2
          %s846 = sadd.s32 %s835, %s845
          %s847 = smul.addr %s846, 128
          %s848 = scalar_lea.hbm %s3, %s847
          %s849 = smul.u32 16, %s838
          %s850 = sshll.u32 %s830, 4
          %s851 = int_to_ptr.vmem [resolvable:$true] %s850
          %s852 = sshll.u32 %s849, 4
          %856 = dma.vmem_to_hbm [thread:$0]  (%p844), %s851, %s852, %s848, %s827, 256, 256, 16
        $region44: #{memory_efficient_linear.1} parent=31 // pred_fallthru
          _
      $region32: #{memory_efficient_linear.1} parent=5 // pred_fallthru
        _
      %p857 = scmp.le.s32.totalorder 2, %s16
      // Predicated region
      $region45: #{memory_efficient_linear.1} parent=5 // pred_check
        %p858 = pneg %p857
      $region46: #{memory_efficient_linear.1} parent=5 // pred_check_branch
        %860 = sbr.rel (%p858) target = $region48
      $region47: #{memory_efficient_linear.1} parent=5 // pred_region
        %s861 = ssub.s32 %s16, 2
        // Predicated region
        $region49: #{memory_efficient_linear.1} parent=47 // pred_check
          %p862 = pneg %p137
        $region50: #{memory_efficient_linear.1} parent=47 // pred_check_branch
          %864 = sbr.rel (%p862) target = $region52
        $region51: #{memory_efficient_linear.1} parent=47 // pred_region
          %s865 = sand.u32 %s122, 1
          %s866 = scalar_lea.sflag [#allocation4], %s865
          %s867 = sand.u32 %s122, 1
          %s868 = smul.addr %s867, 256
          %s869 = scalar_lea.vmem [#allocation7], %s868
          %870 = dma.done %s866, 4096
        $region52: #{memory_efficient_linear.1} parent=47 // pred_fallthru
          _
      $region48: #{memory_efficient_linear.1} parent=5 // pred_fallthru
        _
    $region6: #{memory_efficient_linear.1} parent=1 // loop_footer
      %s20 = sadd.s32 1, %s16
    $region7: #{memory_efficient_linear.1} parent=1 // loop_footer_branch
      %15 = sbr.rel target = $region3
    $region8: #{memory_efficient_linear.1} parent=1 // loop_exit
      _
    %871 = vsyncpa [#allocation3], 1
    %s872 = scalar_lea.sflag [#allocation3], 1
    %873 = vsyncpa %s872, 1
    %874 = vsyncpa [#allocation6], 1
    %875 = vsyncpa [#allocation4], 1
    %s876 = scalar_lea.sflag [#allocation4], 1
    %877 = vsyncpa %s876, 1

</llo_original>
